<compile_context>
chip_gen: v5e
topology: v5e:2x2
jax: 0.10.0
libtpu: 0.0.40
codegen_flags: <defaults>
</compile_context>

<pallas_src>
import jax
import jax.numpy as jnp
from jax.experimental import pallas as pl
from jax.experimental.pallas import tpu as pltpu


def _round_up(n, m):
    return ((n + m - 1) // m) * m


def _critic_kernel(xt_ref, w1_ref, w2h_ref, w2x_ref, w3h_ref, w3x_ref, q_ref):
    """Fused twin-head critic forward for one batch tile (transposed layout).

    xt_ref : [R, tb]        x^T; rows 0..in-1 = features, row `in` = 1.0 (bias)
    w1_ref : [h_pad, R]     layer-1 weights for both heads (+bias column)
    w2h_ref: [h_pad, h_pad] layer-2 block-diagonal hidden weights
    w2x_ref: [h_pad, R]     layer-2 r-term weights (+bias column)
    w3h_ref: [2, h_pad]     layer-3 hidden weights (row 0 = q1, row 1 = q2)
    w3x_ref: [2, R]         layer-3 r-term weights (+bias column)
    q_ref  : [2, tb]        q^T; row 0 = q1, row 1 = q2 (lane-dense output)
    """
    xt = xt_ref[...]

    # Layer 1 (both heads fused, bias folded via the ones row of x^T).
    h = jnp.dot(w1_ref[...], xt, preferred_element_type=jnp.float32)
    h = jnp.maximum(h, 0.0)

    # Layer 2: block-diagonal hidden term + x-shaped r/bias term.
    h = (jnp.dot(w2h_ref[...], h, preferred_element_type=jnp.float32)
         + jnp.dot(w2x_ref[...], xt, preferred_element_type=jnp.float32))
    h = jnp.maximum(h, 0.0)

    # Layer 3: both scalar heads -> lane-dense [2, tb].
    q_ref[...] = (jnp.dot(w3h_ref[...], h, preferred_element_type=jnp.float32)
                  + jnp.dot(w3x_ref[...], xt, preferred_element_type=jnp.float32))


def pack_params(params, *, input_dim, hidden_dim, context_dim):
    """Fuse / transpose / pad the 12 per-layer tensors into 5 aligned slabs."""
    h3 = hidden_dim - 3
    r_dim = input_dim - context_dim
    assert r_dim == 3, "Critic.forward only type-checks when input_dim - context_dim == 3"

    H = 2 * h3                              # fused hidden width (both heads)
    h_pad = _round_up(H, 8)                 # 58 -> 64 (single MXU pass)
    R = _round_up(input_dim + 1, 8)         # features + ones row, padded to 16
    ones_col = input_dim                    # column of x^T that carries 1.0
    f32 = jnp.float32

    w1, b1 = params["w1"], params["b1"]
    w2, b2 = params["w2"], params["b2"]
    w3, b3 = params["w3"], params["b3"]
    w4, b4 = params["w4"], params["b4"]
    w5, b5 = params["w5"], params["b5"]
    w6, b6 = params["w6"], params["b6"]

    # Layer 1: h1^T = relu(W1t @ x^T);  W1t = [W1^T ; W4^T] + bias column.
    w1t = jnp.zeros((h_pad, R), f32)
    w1t = w1t.at[0:h3, 0:input_dim].set(w1.T).at[h3:H, 0:input_dim].set(w4.T)
    w1t = w1t.at[0:h3, ones_col].set(b1[0]).at[h3:H, ones_col].set(b4[0])

    # Layer 2 hidden term: block-diagonal (no cross-head mixing).
    w2ht = jnp.zeros((h_pad, h_pad), f32)
    w2ht = w2ht.at[0:h3, 0:h3].set(w2[:h3].T).at[h3:H, h3:H].set(w5[:h3].T)

    # Layer 2 r-term + bias, expressed against x^T (zero outside r columns).
    w2xt = jnp.zeros((h_pad, R), f32)
    w2xt = w2xt.at[0:h3, context_dim:input_dim].set(w2[h3:].T)
    w2xt = w2xt.at[h3:H, context_dim:input_dim].set(w5[h3:].T)
    w2xt = w2xt.at[0:h3, ones_col].set(b2[0]).at[h3:H, ones_col].set(b5[0])

    # Layer 3: two scalar heads -> rows 0 (q1) and 1 (q2).
    w3ht = jnp.zeros((2, h_pad), f32)
    w3ht = w3ht.at[0, 0:h3].set(w3[:h3, 0]).at[1, h3:H].set(w6[:h3, 0])
    w3xt = jnp.zeros((2, R), f32)
    w3xt = w3xt.at[0, context_dim:input_dim].set(w3[h3:, 0])
    w3xt = w3xt.at[1, context_dim:input_dim].set(w6[h3:, 0])
    w3xt = w3xt.at[0, ones_col].set(b3[0, 0]).at[1, ones_col].set(b6[0, 0])

    return {"w1t": w1t, "w2ht": w2ht, "w2xt": w2xt, "w3ht": w3ht, "w3xt": w3xt,
            "R": R, "h_pad": h_pad, "input_dim": input_dim, "ones_col": ones_col}


def critic_forward(x, packed, *, tile_b=16384):
    """x: [B, input_dim] float32 -> (q1 [B, 1], q2 [B, 1])."""
    B, input_dim = x.shape
    assert input_dim == packed["input_dim"]
    R = packed["R"]

    # Batch tile: multiple of 128 (lane dim).  Large by default so per-step
    # overhead is amortized; ~11 MiB VMEM/step at tb=16384, fits every gen.
    tb = min(_round_up(max(B, 1), 128), tile_b)
    # Keep >=2 grid steps for big batches so v7x's two TensorCores both work.
    if B >= 8192 and -(-B // tb) < 2:
        tb = _round_up(-(-B // 2), 128)
    bp = _round_up(B, tb)

    # Feature-major (transposed) input with a constant-1 row for bias folding.
    # Single XLA transpose/pad op; no row-major padded copy of the batch.
    xt = jnp.zeros((R, bp), jnp.float32)
    xt = xt.at[:input_dim, :B].set(x.T)
    xt = xt.at[packed["ones_col"], :B].set(1.0)

    q = pl.pallas_call(
        _critic_kernel,
        out_shape=jax.ShapeDtypeStruct((2, bp), jnp.float32),
        grid_spec=pltpu.PrefetchScalarGridSpec(
            num_scalar_prefetch=0,
            grid=(bp // tb,),
            in_specs=[
                pl.BlockSpec((R, tb), lambda i: (0, i)),                 # x^T tile
                pl.BlockSpec(packed["w1t"].shape, lambda i: (0, 0)),     # layer 1
                pl.BlockSpec(packed["w2ht"].shape, lambda i: (0, 0)),    # layer 2 (h)
                pl.BlockSpec(packed["w2xt"].shape, lambda i: (0, 0)),    # layer 2 (x)
                pl.BlockSpec(packed["w3ht"].shape, lambda i: (0, 0)),    # layer 3 (h)
                pl.BlockSpec(packed["w3xt"].shape, lambda i: (0, 0)),    # layer 3 (x)
            ],
            out_specs=pl.BlockSpec((2, tb), lambda i: (0, i)),           # q^T tile
        ),
        compiler_params=pltpu.CompilerParams(
            dimension_semantics=("parallel",)),
    )(xt, packed["w1t"], packed["w2ht"], packed["w2xt"],
      packed["w3ht"], packed["w3xt"])

    q1 = q[0, :B].reshape(B, 1)
    q2 = q[1, :B].reshape(B, 1)
    return q1, q2


def init_params(key, input_dim, hidden_dim):
    """nn.Linear-style U(-1/sqrt(fan_in), 1/sqrt(fan_in)) init.
    Weights stored transposed vs torch: [in_features, out_features]; biases [1, out]."""
    h3 = hidden_dim - 3
    layer_dims = {
        "1": (input_dim, h3), "2": (hidden_dim, h3), "3": (hidden_dim, 1),
        "4": (input_dim, h3), "5": (hidden_dim, h3), "6": (hidden_dim, 1),
    }
    params = {}
    for name, (fan_in, fan_out) in layer_dims.items():
        key, kw, kb = jax.random.split(key, 3)
        bound = 1.0 / jnp.sqrt(jnp.float32(fan_in))
        params[f"w{name}"] = jax.random.uniform(
            kw, (fan_in, fan_out), jnp.float32, -bound, bound)
        params[f"b{name}"] = jax.random.uniform(
            kb, (1, fan_out), jnp.float32, -bound, bound)
    return params


def critic_reference(x, params, *, context_dim):
    """Pure-JAX reference matching the PyTorch forward exactly."""
    r = x[:, context_dim:]

    def head(wa, ba, wb, bb, wc, bc):
        h = jax.nn.relu(x @ wa + ba)
        h = jax.nn.relu(jnp.concatenate([h, r], axis=1) @ wb + bb)
        return jnp.concatenate([h, r], axis=1) @ wc + bc

    q1 = head(params["w1"], params["b1"], params["w2"], params["b2"],
              params["w3"], params["b3"])
    q2 = head(params["w4"], params["b4"], params["w5"], params["b5"],
              params["w6"], params["b6"])
    return q1, q2


if __name__ == "__main__":
    # Module constraint: input_dim - context_dim must equal 3.
    batch = 2
    input_dim = 8
    context_dim = 5
    hidden_dim = 32

    key = jax.random.PRNGKey(0)
    key, kx, kx2 = jax.random.split(key, 3)
    x = jax.random.normal(kx, (batch, input_dim), jnp.float32)
    params = init_params(key, input_dim, hidden_dim)
    packed = pack_params(params, input_dim=input_dim, hidden_dim=hidden_dim,
                         context_dim=context_dim)

    # Single-tile case.
    q1, q2 = critic_forward(x, packed)
    jax.block_until_ready((q1, q2))
    q1_ref, q2_ref = critic_reference(x, params, context_dim=context_dim)
    assert q1.shape == (batch, 1) and q2.shape == (batch, 1)
    assert jnp.allclose(q1, q1_ref, atol=1e-5, rtol=1e-5)
    assert jnp.allclose(q2, q2_ref, atol=1e-5, rtol=1e-5)

    # Multi-tile case (exercises the grid + ragged batch tail) with a tiny tile.
    batch2 = 300
    x2 = jax.random.normal(kx2, (batch2, input_dim), jnp.float32)
    q1b, q2b = critic_forward(x2, packed, tile_b=128)
    jax.block_until_ready((q1b, q2b))
    q1b_ref, q2b_ref = critic_reference(x2, params, context_dim=context_dim)
    assert jnp.allclose(q1b, q1b_ref, atol=1e-5, rtol=1e-5)
    assert jnp.allclose(q2b, q2b_ref, atol=1e-5, rtol=1e-5)

    print("KERNEL_OK")
</pallas_src>

<mosaic_0001>
module attributes {stable_mosaic.version = 11 : i64} {
  func.func @_critic_kernel(%arg0: i32, %arg1: memref<16x128xf32, #tpu.memory_space<vmem>>, %arg2: memref<64x16xf32, #tpu.memory_space<vmem>>, %arg3: memref<64x64xf32, #tpu.memory_space<vmem>>, %arg4: memref<64x16xf32, #tpu.memory_space<vmem>>, %arg5: memref<2x64xf32, #tpu.memory_space<vmem>>, %arg6: memref<2x16xf32, #tpu.memory_space<vmem>>, %arg7: memref<2x128xf32, #tpu.memory_space<vmem>>) attributes {dimension_semantics = [#tpu.dimension_semantics<parallel>], iteration_bounds = array<i64: 1>, scalar_prefetch = 0 : i64, scratch_operands = 0 : i64, tpu.core_type = #tpu.core_type<tc>, window_params = [{transform_indices = @transform_0, window_bounds = array<i64: 16, 128>}, {pipeline_mode = #tpu.pipeline_mode<synchronous>, transform_indices = @transform_1, window_bounds = array<i64: 64, 16>}, {pipeline_mode = #tpu.pipeline_mode<synchronous>, transform_indices = @transform_2, window_bounds = array<i64: 64, 64>}, {pipeline_mode = #tpu.pipeline_mode<synchronous>, transform_indices = @transform_3, window_bounds = array<i64: 64, 16>}, {pipeline_mode = #tpu.pipeline_mode<synchronous>, transform_indices = @transform_4, window_bounds = array<i64: 2, 64>}, {pipeline_mode = #tpu.pipeline_mode<synchronous>, transform_indices = @transform_5, window_bounds = array<i64: 2, 16>}, {transform_indices = @transform_6, window_bounds = array<i64: 2, 128>}]} {
    %c0 = arith.constant 0 : index
    %c0_0 = arith.constant 0 : index
    %0 = vector.load %arg1[%c0, %c0_0] : memref<16x128xf32, #tpu.memory_space<vmem>>, vector<16x128xf32>
    %c0_1 = arith.constant 0 : index
    %c0_2 = arith.constant 0 : index
    %1 = vector.load %arg2[%c0_1, %c0_2] : memref<64x16xf32, #tpu.memory_space<vmem>>, vector<64x16xf32>
    %cst = arith.constant dense<0.000000e+00> : vector<64x128xf32>
    %2 = tpu.matmul %1, %0, %cst {dimension_numbers = #tpu.dot_dimension_numbers<[1], [0], [0], [1], [0, 0, 1, 1], [], []>} : vector<64x16xf32>, vector<16x128xf32>, vector<64x128xf32> -> vector<64x128xf32>
    %cst_3 = arith.constant 0.000000e+00 : f32
    %3 = vector.broadcast %cst_3 : f32 to vector<64x128xf32>
    %4 = arith.maximumf %2, %3 : vector<64x128xf32>
    %c0_4 = arith.constant 0 : index
    %c0_5 = arith.constant 0 : index
    %5 = vector.load %arg3[%c0_4, %c0_5] : memref<64x64xf32, #tpu.memory_space<vmem>>, vector<64x64xf32>
    %cst_6 = arith.constant dense<0.000000e+00> : vector<64x128xf32>
    %6 = tpu.matmul %5, %4, %cst_6 {dimension_numbers = #tpu.dot_dimension_numbers<[1], [0], [0], [1], [0, 0, 1, 1], [], []>} : vector<64x64xf32>, vector<64x128xf32>, vector<64x128xf32> -> vector<64x128xf32>
    %c0_7 = arith.constant 0 : index
    %c0_8 = arith.constant 0 : index
    %7 = vector.load %arg4[%c0_7, %c0_8] : memref<64x16xf32, #tpu.memory_space<vmem>>, vector<64x16xf32>
    %cst_9 = arith.constant dense<0.000000e+00> : vector<64x128xf32>
    %8 = tpu.matmul %7, %0, %cst_9 {dimension_numbers = #tpu.dot_dimension_numbers<[1], [0], [0], [1], [0, 0, 1, 1], [], []>} : vector<64x16xf32>, vector<16x128xf32>, vector<64x128xf32> -> vector<64x128xf32>
    %9 = arith.addf %6, %8 : vector<64x128xf32>
    %cst_10 = arith.constant 0.000000e+00 : f32
    %10 = vector.broadcast %cst_10 : f32 to vector<64x128xf32>
    %11 = arith.maximumf %9, %10 : vector<64x128xf32>
    %c0_11 = arith.constant 0 : index
    %c0_12 = arith.constant 0 : index
    %12 = vector.load %arg5[%c0_11, %c0_12] : memref<2x64xf32, #tpu.memory_space<vmem>>, vector<2x64xf32>
    %cst_13 = arith.constant dense<0.000000e+00> : vector<2x128xf32>
    %13 = tpu.matmul %12, %11, %cst_13 {dimension_numbers = #tpu.dot_dimension_numbers<[1], [0], [0], [1], [0, 0, 1, 1], [], []>} : vector<2x64xf32>, vector<64x128xf32>, vector<2x128xf32> -> vector<2x128xf32>
    %c0_14 = arith.constant 0 : index
    %c0_15 = arith.constant 0 : index
    %14 = vector.load %arg6[%c0_14, %c0_15] : memref<2x16xf32, #tpu.memory_space<vmem>>, vector<2x16xf32>
    %cst_16 = arith.constant dense<0.000000e+00> : vector<2x128xf32>
    %15 = tpu.matmul %14, %0, %cst_16 {dimension_numbers = #tpu.dot_dimension_numbers<[1], [0], [0], [1], [0, 0, 1, 1], [], []>} : vector<2x16xf32>, vector<16x128xf32>, vector<2x128xf32> -> vector<2x128xf32>
    %16 = arith.addf %13, %15 : vector<2x128xf32>
    %c0_17 = arith.constant 0 : index
    %c0_18 = arith.constant 0 : index
    %17 = vector.load %arg7[%c0_17, %c0_18] : memref<2x128xf32, #tpu.memory_space<vmem>>, vector<2x128xf32>
    tpu.vector_store %arg7[%c0_17, %c0_18], %16 {strides = array<i32>} : memref<2x128xf32, #tpu.memory_space<vmem>>, vector<2x128xf32>,
    return
  }
  func.func @transform_0(%arg0: i32) -> (i32, i32) {
    %c0_i32 = arith.constant 0 : i32
    %c0_i32_0 = arith.constant 0 : i32
    return %c0_i32, %arg0 : i32, i32
  }
  func.func @transform_1(%arg0: i32) -> (i32, i32) {
    %c0_i32 = arith.constant 0 : i32
    %c0_i32_0 = arith.constant 0 : i32
    %c0_i32_1 = arith.constant 0 : i32
    return %c0_i32, %c0_i32_0 : i32, i32
  }
  func.func @transform_2(%arg0: i32) -> (i32, i32) {
    %c0_i32 = arith.constant 0 : i32
    %c0_i32_0 = arith.constant 0 : i32
    %c0_i32_1 = arith.constant 0 : i32
    return %c0_i32, %c0_i32_0 : i32, i32
  }
  func.func @transform_3(%arg0: i32) -> (i32, i32) {
    %c0_i32 = arith.constant 0 : i32
    %c0_i32_0 = arith.constant 0 : i32
    %c0_i32_1 = arith.constant 0 : i32
    return %c0_i32, %c0_i32_0 : i32, i32
  }
  func.func @transform_4(%arg0: i32) -> (i32, i32) {
    %c0_i32 = arith.constant 0 : i32
    %c0_i32_0 = arith.constant 0 : i32
    %c0_i32_1 = arith.constant 0 : i32
    return %c0_i32, %c0_i32_0 : i32, i32
  }
  func.func @transform_5(%arg0: i32) -> (i32, i32) {
    %c0_i32 = arith.constant 0 : i32
    %c0_i32_0 = arith.constant 0 : i32
    %c0_i32_1 = arith.constant 0 : i32
    return %c0_i32, %c0_i32_0 : i32, i32
  }
  func.func @transform_6(%arg0: i32) -> (i32, i32) {
    %c0_i32 = arith.constant 0 : i32
    %c0_i32_0 = arith.constant 0 : i32
    return %c0_i32, %arg0 : i32, i32
  }
}

</mosaic_0001>

<llo_original>
// kernel: tpu_custom_call.1
$region0: #{tpu_custom_call.1}
  #allocation0 [shape = 'u32[]', space=smem, size = 0x4, offset = 0x4, fixed_abs, tag = 'smem constant byte address 0x4 - core index']
  #allocation1 [shape = 'u32[72,128]{1,0:T(1,128)}', space=vmem, size = 0x9000, scoped, tag = 'internal scratch']
  %s0 = inlined_call_operand.vmem [shape: f32[16,128], index: 0, kind: input, shape index: {}]
  %s1 = inlined_call_operand.vmem [shape: f32[64,16], index: 1, kind: input, shape index: {}]
  %s2 = inlined_call_operand.vmem [shape: f32[64,64], index: 2, kind: input, shape index: {}]
  %s3 = inlined_call_operand.vmem [shape: f32[64,16], index: 3, kind: input, shape index: {}]
  %s4 = inlined_call_operand.vmem [shape: f32[2,64], index: 4, kind: input, shape index: {}]
  %s5 = inlined_call_operand.vmem [shape: f32[2,16], index: 5, kind: input, shape index: {}]
  %s6 = inlined_call_operand.hbm [shape: f32[2,128], index: 6, kind: output, shape index: {}]
  %s7 = sld [smem:[#allocation0]]
  $region34: #{tpu_custom_call.1} parent=0
    _
  %s9 = ssub.s32 1, %s7
  %s10 = scalar_select 0, %s9, %s7
  $region1: #{tpu_custom_call.1} parent=0
    #allocation2 [shape = 'u8[1024]{0}', space=vmem, size = 0x400, scoped, tag = 'output window, operand 0, single buffered']
    #allocation3 [shape = 's32[1]{0}', space=sflag, size = 0x4, scoped, tag = 'scoped memory for tpu_custom_call.1']
    %11 = vsyncpa [#allocation3], 0
    // Predicated region
    $region2: #{tpu_custom_call.1} parent=1 // pred_check
      _
    $region3: #{tpu_custom_call.1} parent=1 // pred_check_branch
      %13 = sbr.rel (0) target = $region5
    $region4: #{tpu_custom_call.1} parent=1 // pred_region
      _
    $region5: #{tpu_custom_call.1} parent=1 // pred_fallthru
      _
    // Predicated region
    $region6: #{tpu_custom_call.1} parent=1 // pred_check
      _
    $region7: #{tpu_custom_call.1} parent=1 // pred_check_branch
      %15 = sbr.rel (0) target = $region9
    $region8: #{tpu_custom_call.1} parent=1 // pred_region
      _
    $region9: #{tpu_custom_call.1} parent=1 // pred_fallthru
      _
    // Predicated region
    $region10: #{tpu_custom_call.1} parent=1 // pred_check
      _
    $region11: #{tpu_custom_call.1} parent=1 // pred_check_branch
      %17 = sbr.rel (0) target = $region13
    $region12: #{tpu_custom_call.1} parent=1 // pred_region
      _
    $region13: #{tpu_custom_call.1} parent=1 // pred_fallthru
      _
    // Predicated region
    $region14: #{tpu_custom_call.1} parent=1 // pred_check
      _
    $region15: #{tpu_custom_call.1} parent=1 // pred_check_branch
      %19 = sbr.rel (0) target = $region17
    $region16: #{tpu_custom_call.1} parent=1 // pred_region
      _
    $region17: #{tpu_custom_call.1} parent=1 // pred_fallthru
      _
    // Predicated region
    $region18: #{tpu_custom_call.1} parent=1 // pred_check
      _
    $region19: #{tpu_custom_call.1} parent=1 // pred_check_branch
      %21 = sbr.rel (0) target = $region21
    $region20: #{tpu_custom_call.1} parent=1 // pred_region
      _
    $region21: #{tpu_custom_call.1} parent=1 // pred_fallthru
      _
    // Predicated region
    $region22: #{tpu_custom_call.1} parent=1 // pred_check
      _
    $region23: #{tpu_custom_call.1} parent=1 // pred_check_branch
      %23 = sbr.rel (0) target = $region25
    $region24: #{tpu_custom_call.1} parent=1 // pred_region
      _
    $region25: #{tpu_custom_call.1} parent=1 // pred_fallthru
      _
    %v24 = vld [vmem:[%s0] sm:$0xff]
    %v25 = vld [vmem:[%s0 + $0x8] sm:$0xff]
    %v26 = vld [vmem:[%s1] sm:$0xff]
    %v27 = vld [vmem:[%s1 + $0x8] sm:$0xff]
    %v28 = vld [vmem:[%s1 + $0x10] sm:$0xff]
    %v29 = vld [vmem:[%s1 + $0x18] sm:$0xff]
    %v30 = vld [vmem:[%s1 + $0x20] sm:$0xff]
    %v31 = vld [vmem:[%s1 + $0x28] sm:$0xff]
    %v32 = vld [vmem:[%s1 + $0x30] sm:$0xff]
    %v33 = vld [vmem:[%s1 + $0x38] sm:$0xff]
    %vm34 = vcmask 130048
    %v36 = vsel %vm34, %v26, 0
    %v39 = vsel %vm34, %v27, 0
    %v42 = vsel %vm34, %v28, 0
    %v45 = vsel %vm34, %v29, 0
    %v48 = vsel %vm34, %v30, 0
    %v51 = vsel %vm34, %v31, 0
    %v54 = vsel %vm34, %v32, 0
    %v57 = vsel %vm34, %v33, 0
    %59 = vmatpush.msra.mxu0 0.0
    %60 = vmatpush.msra.mxu0 0.0
    %61 = vmatpush.msra.mxu0 0.0
    %62 = vmatpush.msra.mxu0 0.0
    %63 = vmatpush.msra.mxu0 0.0
    %64 = vmatpush.msra.mxu0 0.0
    %65 = vmatpush.msra.mxu0 0.0
    %66 = vmatpush.msra.mxu0 0.0
    %67 = vmatpush.msra.mxu0 0.0
    %68 = vmatpush.msra.mxu0 0.0
    %69 = vmatpush.msra.mxu0 0.0
    %70 = vmatpush.msra.mxu0 0.0
    %71 = vmatpush.msra.mxu0 0.0
    %72 = vmatpush.msra.mxu0 0.0
    %73 = vmatpush.msra.mxu0 %v25
    %74 = vmatpush.msra.mxu0 %v24
    %75 = vmatmul.f32.gmra.mxu0 %v36
    %v76 = vpop.f32.mrf.mxu0
    %v77 = vadd.f32 0.0, %v76
    %78 = vmatmul.f32.gmra.mxu0 %v39
    %v79 = vpop.f32.mrf.mxu0
    %v80 = vadd.f32 0.0, %v79
    %81 = vmatmul.f32.gmra.mxu0 %v42
    %v82 = vpop.f32.mrf.mxu0
    %v83 = vadd.f32 0.0, %v82
    %84 = vmatmul.f32.gmra.mxu0 %v45
    %v85 = vpop.f32.mrf.mxu0
    %v86 = vadd.f32 0.0, %v85
    %87 = vmatmul.f32.gmra.mxu0 %v48
    %v88 = vpop.f32.mrf.mxu0
    %v89 = vadd.f32 0.0, %v88
    %90 = vmatmul.f32.gmra.mxu0 %v51
    %v91 = vpop.f32.mrf.mxu0
    %v92 = vadd.f32 0.0, %v91
    %93 = vmatmul.f32.gmra.mxu0 %v54
    %v94 = vpop.f32.mrf.mxu0
    %v95 = vadd.f32 0.0, %v94
    %96 = vmatmul.f32.gmra.mxu0 %v57
    %v97 = vpop.f32.mrf.mxu0
    %v98 = vadd.f32 0.0, %v97
    %99 = vdwg.mxu0
    %v100 = vmax.f32 %v77, 0.0
    %v101 = vmax.f32 %v80, 0.0
    %v102 = vmax.f32 %v83, 0.0
    %v103 = vmax.f32 %v86, 0.0
    %v104 = vmax.f32 %v89, 0.0
    %v105 = vmax.f32 %v92, 0.0
    %v106 = vmax.f32 %v95, 0.0
    %v107 = vmax.f32 %v98, 0.0
    %v108 = vld [vmem:[%s2] sm:$0xff]
    %v109 = vld [vmem:[%s2 + $0x8] sm:$0xff]
    %v110 = vld [vmem:[%s2 + $0x10] sm:$0xff]
    %v111 = vld [vmem:[%s2 + $0x18] sm:$0xff]
    %v112 = vld [vmem:[%s2 + $0x20] sm:$0xff]
    %v113 = vld [vmem:[%s2 + $0x28] sm:$0xff]
    %v114 = vld [vmem:[%s2 + $0x30] sm:$0xff]
    %v115 = vld [vmem:[%s2 + $0x38] sm:$0xff]
    %v116 = vld [vmem:[%s3] sm:$0xff]
    %v117 = vld [vmem:[%s3 + $0x8] sm:$0xff]
    %v118 = vld [vmem:[%s3 + $0x10] sm:$0xff]
    %v119 = vld [vmem:[%s3 + $0x18] sm:$0xff]
    %v120 = vld [vmem:[%s3 + $0x20] sm:$0xff]
    %v121 = vld [vmem:[%s3 + $0x28] sm:$0xff]
    %v122 = vld [vmem:[%s3 + $0x30] sm:$0xff]
    %v123 = vld [vmem:[%s3 + $0x38] sm:$0xff]
    %v125 = vsel %vm34, %v116, 0
    %v128 = vsel %vm34, %v117, 0
    %v131 = vsel %vm34, %v118, 0
    %v134 = vsel %vm34, %v119, 0
    %v137 = vsel %vm34, %v120, 0
    %v140 = vsel %vm34, %v121, 0
    %v143 = vsel %vm34, %v122, 0
    %v146 = vsel %vm34, %v123, 0
    %148 = vmatpush.msra.mxu0 0.0
    %149 = vmatpush.msra.mxu0 0.0
    %150 = vmatpush.msra.mxu0 0.0
    %151 = vmatpush.msra.mxu0 0.0
    %152 = vmatpush.msra.mxu0 0.0
    %153 = vmatpush.msra.mxu0 0.0
    %154 = vmatpush.msra.mxu0 0.0
    %155 = vmatpush.msra.mxu0 0.0
    %156 = vmatpush.msra.mxu0 0.0
    %157 = vmatpush.msra.mxu0 0.0
    %158 = vmatpush.msra.mxu0 0.0
    %159 = vmatpush.msra.mxu0 0.0
    %160 = vmatpush.msra.mxu0 0.0
    %161 = vmatpush.msra.mxu0 0.0
    %162 = vmatpush.msra.mxu0 %v25
    %163 = vmatpush.msra.mxu0 %v24
    %164 = vmatmul.f32.gmra.mxu0 %v125
    %v165 = vpop.f32.mrf.mxu0
    %v166 = vadd.f32 0.0, %v165
    %167 = vmatmul.f32.gmra.mxu0 %v128
    %v168 = vpop.f32.mrf.mxu0
    %v169 = vadd.f32 0.0, %v168
    %170 = vmatmul.f32.gmra.mxu0 %v131
    %v171 = vpop.f32.mrf.mxu0
    %v172 = vadd.f32 0.0, %v171
    %173 = vmatmul.f32.gmra.mxu0 %v134
    %v174 = vpop.f32.mrf.mxu0
    %v175 = vadd.f32 0.0, %v174
    %176 = vmatmul.f32.gmra.mxu0 %v137
    %v177 = vpop.f32.mrf.mxu0
    %v178 = vadd.f32 0.0, %v177
    %179 = vmatmul.f32.gmra.mxu0 %v140
    %v180 = vpop.f32.mrf.mxu0
    %v181 = vadd.f32 0.0, %v180
    %182 = vmatmul.f32.gmra.mxu0 %v143
    %v183 = vpop.f32.mrf.mxu0
    %v184 = vadd.f32 0.0, %v183
    %185 = vmatmul.f32.gmra.mxu0 %v146
    %v186 = vpop.f32.mrf.mxu0
    %v187 = vadd.f32 0.0, %v186
    %188 = vdwg.mxu0
    %vm189 = vcmask 523264
    %v191 = vsel %vm189, %v108, 0
    %v194 = vsel %vm189, %v109, 0
    %v197 = vsel %vm189, %v110, 0
    %v200 = vsel %vm189, %v111, 0
    %v203 = vsel %vm189, %v112, 0
    %v206 = vsel %vm189, %v113, 0
    %v209 = vsel %vm189, %v114, 0
    %v212 = vsel %vm189, %v115, 0
    %214 = vmatpush.msra.mxu0 0.0
    %215 = vmatpush.msra.mxu0 0.0
    %216 = vmatpush.msra.mxu0 0.0
    %217 = vmatpush.msra.mxu0 0.0
    %218 = vmatpush.msra.mxu0 0.0
    %219 = vmatpush.msra.mxu0 0.0
    %220 = vmatpush.msra.mxu0 0.0
    %221 = vmatpush.msra.mxu0 0.0
    %222 = vmatpush.msra.mxu0 %v107
    %223 = vmatpush.msra.mxu0 %v106
    %224 = vmatpush.msra.mxu0 %v105
    %225 = vmatpush.msra.mxu0 %v104
    %226 = vmatpush.msra.mxu0 %v103
    %227 = vmatpush.msra.mxu0 %v102
    %228 = vmatpush.msra.mxu0 %v101
    %229 = vmatpush.msra.mxu0 %v100
    %230 = vmatmul.f32.gmra.mxu0 %v191
    %v231 = vpop.f32.mrf.mxu0
    %v232 = vadd.f32 %v166, %v231
    %233 = vmatmul.f32.gmra.mxu0 %v194
    %v234 = vpop.f32.mrf.mxu0
    %v235 = vadd.f32 %v169, %v234
    %236 = vmatmul.f32.gmra.mxu0 %v197
    %v237 = vpop.f32.mrf.mxu0
    %v238 = vadd.f32 %v172, %v237
    %239 = vmatmul.f32.gmra.mxu0 %v200
    %v240 = vpop.f32.mrf.mxu0
    %v241 = vadd.f32 %v175, %v240
    %242 = vmatmul.f32.gmra.mxu0 %v203
    %v243 = vpop.f32.mrf.mxu0
    %v244 = vadd.f32 %v178, %v243
    %245 = vmatmul.f32.gmra.mxu0 %v206
    %v246 = vpop.f32.mrf.mxu0
    %v247 = vadd.f32 %v181, %v246
    %248 = vmatmul.f32.gmra.mxu0 %v209
    %v249 = vpop.f32.mrf.mxu0
    %v250 = vadd.f32 %v184, %v249
    %251 = vmatmul.f32.gmra.mxu0 %v212
    %v252 = vpop.f32.mrf.mxu0
    %v253 = vadd.f32 %v187, %v252
    %254 = vdwg.mxu0
    %v255 = vmax.f32 %v232, 0.0
    %v256 = vmax.f32 %v235, 0.0
    %v257 = vmax.f32 %v238, 0.0
    %v258 = vmax.f32 %v241, 0.0
    %v259 = vmax.f32 %v244, 0.0
    %v260 = vmax.f32 %v247, 0.0
    %v261 = vmax.f32 %v250, 0.0
    %v262 = vmax.f32 %v253, 0.0
    %v263 = vld [vmem:[%s4] sm:$0x3]
    %v264 = vld [vmem:[%s5] sm:$0x3]
    %v266 = vsel %vm34, %v264, 0
    %268 = vmatpush.msra.mxu0 0.0
    %269 = vmatpush.msra.mxu0 0.0
    %270 = vmatpush.msra.mxu0 0.0
    %271 = vmatpush.msra.mxu0 0.0
    %272 = vmatpush.msra.mxu0 0.0
    %273 = vmatpush.msra.mxu0 0.0
    %274 = vmatpush.msra.mxu0 0.0
    %275 = vmatpush.msra.mxu0 0.0
    %276 = vmatpush.msra.mxu0 0.0
    %277 = vmatpush.msra.mxu0 0.0
    %278 = vmatpush.msra.mxu0 0.0
    %279 = vmatpush.msra.mxu0 0.0
    %280 = vmatpush.msra.mxu0 0.0
    %281 = vmatpush.msra.mxu0 0.0
    %282 = vmatpush.msra.mxu0 %v25
    %283 = vmatpush.msra.mxu0 %v24
    %284 = vmatmul.f32.gmra.mxu0 %v266
    %v285 = vpop.f32.mrf.mxu0
    %v286 = vadd.f32 0.0, %v285
    %287 = vdwg.mxu0
    %v289 = vsel %vm189, %v263, 0
    %291 = vmatpush.msra.mxu0 0.0
    %292 = vmatpush.msra.mxu0 0.0
    %293 = vmatpush.msra.mxu0 0.0
    %294 = vmatpush.msra.mxu0 0.0
    %295 = vmatpush.msra.mxu0 0.0
    %296 = vmatpush.msra.mxu0 0.0
    %297 = vmatpush.msra.mxu0 0.0
    %298 = vmatpush.msra.mxu0 0.0
    %299 = vmatpush.msra.mxu0 %v262
    %300 = vmatpush.msra.mxu0 %v261
    %301 = vmatpush.msra.mxu0 %v260
    %302 = vmatpush.msra.mxu0 %v259
    %303 = vmatpush.msra.mxu0 %v258
    %304 = vmatpush.msra.mxu0 %v257
    %305 = vmatpush.msra.mxu0 %v256
    %306 = vmatpush.msra.mxu0 %v255
    %307 = vmatmul.f32.gmra.mxu0 %v289
    %v308 = vpop.f32.mrf.mxu0
    %v309 = vadd.f32 %v286, %v308
    %310 = vdwg.mxu0
    %311 = vst [vmem:[#allocation2] sm:$0x3] %v309
    // Predicated region
    $region26: #{tpu_custom_call.1} parent=1 // pred_check
      _
    $region27: #{tpu_custom_call.1} parent=1 // pred_check_branch
      %313 = sbr.rel (0) target = $region29
    $region28: #{tpu_custom_call.1} parent=1 // pred_region
      %315 = vsyncadd [#allocation3], 0
      %s317 = sshll.u32 [#allocation2], 4
      %s318 = int_to_ptr.vmem [resolvable:$true] %s317
      %s319 = sshll.u32 %s6, 4
      %s320 = int_to_ptr.hbm [resolvable:$true] %s319
      %322 = dma.vmem_to_hbm [thread:$0]  %s318, 32, %s320, [#allocation3]
    $region29: #{tpu_custom_call.1} parent=1 // pred_fallthru
      _
    // Predicated region
    $region30: #{tpu_custom_call.1} parent=1 // pred_check
      _
    $region31: #{tpu_custom_call.1} parent=1 // pred_check_branch
      %324 = sbr.rel (0) target = $region33
    $region32: #{tpu_custom_call.1} parent=1 // pred_region
      %326 = dma.done [#allocation3], 32
    $region33: #{tpu_custom_call.1} parent=1 // pred_fallthru
      _
    %327 = vsyncpa [#allocation3], 1

</llo_original>
